<compile_context>
chip_gen: v7x
topology: tpu7x:2x2x1
jax: 0.10.0
libtpu: 0.0.40
codegen_flags: <defaults>
</compile_context>

<pallas_src>
import functools

import jax
import jax.numpy as jnp
import numpy as np
from jax.experimental import pallas as pl
from jax.experimental.pallas import tpu as pltpu


def _conv3x3_relu_kernel(x_ref, w_ref, m_ref, o_ref, *, C_in, C_out, H, W, Nb):
    """Nb batch elements: 3x3 conv (stride 1, pad 1, no bias) + ReLU.

    x_ref : (Nb, C_in, H*W)    f32   flattened input images
    w_ref : (C_out, 9*C_in)    bf16  weights, K index = (3*kh + kw)*C_in + c
    m_ref : (9, 1, H*W)        f32   per-tap validity masks (tap t = 3*kh + kw)
    o_ref : (Nb, C_out, H*W)   f32   flattened output images
    """
    HW = H * W
    w = w_ref[...]                              # (C_out, 9*C_in) bf16, grid-resident

    for n in range(Nb):                         # static unroll over images in this block
        x = x_ref[n]                            # (C_in, HW) f32
        taps = []
        for t in range(9):                      # unrolled 3x3 stencil, tap-major K order
            dh = t // 3 - 1
            dw = t % 3 - 1
            shift = dh * W + dw                 # flat offset of the needed input element
            if shift == 0:
                taps.append(x)                  # centre tap: no shift -> no wrap, no mask
            else:
                # out[p] = x[p + shift] (where valid)  ==  roll by -shift, then mask
                rolled = pltpu.roll(x, shift=(-shift) % HW, axis=1)   # XLU lane rotate
                taps.append(rolled * m_ref[t])  # mask kills row-wrap / out-of-image pos.
        patches = jnp.concatenate(taps, axis=0)                 # (9*C_in, HW) im2col
        out = jnp.dot(w, patches.astype(jnp.bfloat16),          # single MXU matmul,
                      preferred_element_type=jnp.float32)       # K = 9*C_in, f32 acc
        o_ref[n] = jnp.maximum(out, 0.0).astype(o_ref.dtype)    # fused ReLU, lane-dense


def _tap_masks(H, W):
    """(9, 1, H*W) f32 validity masks, tap-major (t = 3*kh + kw).

    mask[t][p] == 1 iff the input element needed for output position p under tap
    (dh, dw) lies inside the image (covers both row-wrap and top/bottom wrap,
    as required by the pltpu.roll formulation).
    """
    hh, ww = np.meshgrid(np.arange(H), np.arange(W), indexing="ij")
    masks = np.zeros((9, 1, H * W), np.float32)
    for t in range(9):
        dh = t // 3 - 1
        dw = t % 3 - 1
        valid = (hh + dh >= 0) & (hh + dh < H) & (ww + dw >= 0) & (ww + dw < W)
        masks[t, 0] = valid.reshape(-1).astype(np.float32)
    return jnp.asarray(masks)


def basic_block_forward(x_nchw, weight, *, images_per_step=None):
    """ReLU(Conv2d(kernel=3, stride=1, padding=1, bias=False)(x)); NCHW in / NCHW out.

    Args:
      x_nchw: (N, C_in, H, W) float32 input (PyTorch NCHW convention).
      weight: (C_out, C_in, 3, 3) float32 conv weight (PyTorch OIHW convention).
    Returns:
      (N, C_out, H, W) float32 output.
    """
    N, C_in, H, W = x_nchw.shape
    C_out = weight.shape[0]
    HW = H * W

    # Batch block size: amortize per-grid-step overhead over several images.
    if images_per_step is None:
        Nb = 1
        for cand in (8, 4, 2, 1):
            if N % cand == 0:
                Nb = cand
                break
    else:
        Nb = images_per_step
    assert N % Nb == 0, "batch must be divisible by images_per_step"

    # Free (metadata-only) reshape: (N, C, H, W) -> (N, C, H*W).
    x_flat = x_nchw.reshape(N, C_in, HW)

    # OIHW -> (C_out, 9*C_in) with K index = (3*kh + kw)*C_in + c; bf16 once.
    w_k = jnp.transpose(weight, (0, 2, 3, 1)).reshape(C_out, 9 * C_in)
    w_k = w_k.astype(jnp.bfloat16)

    masks = _tap_masks(H, W)

    kernel = functools.partial(
        _conv3x3_relu_kernel, C_in=C_in, C_out=C_out, H=H, W=W, Nb=Nb)

    out_flat = pl.pallas_call(
        kernel,
        out_shape=jax.ShapeDtypeStruct((N, C_out, HW), x_nchw.dtype),
        grid_spec=pltpu.PrefetchScalarGridSpec(
            num_scalar_prefetch=0,
            grid=(N // Nb,),
            in_specs=[
                # Nb flattened images per grid step (lane-dense last dim).
                pl.BlockSpec((Nb, C_in, HW), lambda n: (n, 0, 0)),
                # Full weights / masks, resident across the grid (constant index_map).
                pl.BlockSpec((C_out, 9 * C_in), lambda n: (0, 0)),
                pl.BlockSpec((9, 1, HW), lambda n: (0, 0, 0)),
            ],
            out_specs=pl.BlockSpec((Nb, C_out, HW), lambda n: (n, 0, 0)),
        ),
        compiler_params=pltpu.CompilerParams(
            dimension_semantics=("parallel",),   # batch axis: shardable across TCs
        ),
    )(x_flat, w_k, masks)

    # Free reshape back to NCHW.
    return out_flat.reshape(N, C_out, H, W)


if __name__ == "__main__":
    # Small deterministic example: batch=2, ch_in=4, ch_out=8, spatial=16x16.
    N, C_in, C_out, H, W = 2, 4, 8, 16, 16

    key = jax.random.PRNGKey(0)
    kx, kw = jax.random.split(key)
    x = jax.random.normal(kx, (N, C_in, H, W), dtype=jnp.float32)
    weight = jax.random.normal(kw, (C_out, C_in, 3, 3), dtype=jnp.float32) * 0.1

    fwd = jax.jit(basic_block_forward)
    out = jax.block_until_ready(fwd(x, weight))

    # Reference: same bf16-rounded inputs (the kernel feeds bf16 into the MXU with
    # an f32 accumulator), full-precision conv + ReLU.
    xb = x.astype(jnp.bfloat16).astype(jnp.float32)
    wb = weight.astype(jnp.bfloat16).astype(jnp.float32)
    ref = jax.lax.conv_general_dilated(
        xb, wb,
        window_strides=(1, 1),
        padding=((1, 1), (1, 1)),
        dimension_numbers=("NCHW", "OIHW", "NCHW"),
        precision=jax.lax.Precision.HIGHEST,
    )
    ref = jnp.maximum(ref, 0.0)

    assert out.shape == (N, C_out, H, W)
    max_err = float(jnp.max(jnp.abs(out - ref)))
    assert jnp.allclose(out, ref, atol=1e-2, rtol=1e-2), max_err
    print("KERNEL_OK")
</pallas_src>

<mosaic_0001>
module attributes {stable_mosaic.version = 11 : i64} {
  func.func @_conv3x3_relu_kernel(%arg0: i32, %arg1: memref<2x4x256xf32, #tpu.memory_space<vmem>>, %arg2: memref<8x36xbf16, #tpu.memory_space<vmem>>, %arg3: memref<9x1x256xf32, #tpu.memory_space<vmem>>, %arg4: memref<2x8x256xf32, #tpu.memory_space<vmem>>) attributes {dimension_semantics = [#tpu.dimension_semantics<parallel>], iteration_bounds = array<i64: 1>, scalar_prefetch = 0 : i64, scratch_operands = 0 : i64, tpu.core_type = #tpu.core_type<tc>, window_params = [{transform_indices = @transform_0, window_bounds = array<i64: 2, 4, 256>}, {pipeline_mode = #tpu.pipeline_mode<synchronous>, transform_indices = @transform_1, window_bounds = array<i64: 8, 36>}, {pipeline_mode = #tpu.pipeline_mode<synchronous>, transform_indices = @transform_2, window_bounds = array<i64: 9, 1, 256>}, {transform_indices = @transform_3, window_bounds = array<i64: 2, 8, 256>}]} {
    %c0 = arith.constant 0 : index
    %c0_0 = arith.constant 0 : index
    %0 = vector.load %arg2[%c0, %c0_0] : memref<8x36xbf16, #tpu.memory_space<vmem>>, vector<8x36xbf16>
    %c0_1 = arith.constant 0 : index
    %c0_2 = arith.constant 0 : index
    %c0_3 = arith.constant 0 : index
    %1 = vector.load %arg1[%c0_1, %c0_2, %c0_3] : memref<2x4x256xf32, #tpu.memory_space<vmem>>, vector<1x4x256xf32>
    %2 = vector.shape_cast %1 : vector<1x4x256xf32> to vector<4x256xf32>
    %c17_i32 = arith.constant 17 : i32
    %3 = tpu.dynamic_rotate %2 by %c17_i32 dim 1 : vector<4x256xf32>, i32 -> vector<4x256xf32>
    %c0_4 = arith.constant 0 : index
    %c0_5 = arith.constant 0 : index
    %c0_6 = arith.constant 0 : index
    %4 = vector.load %arg3[%c0_4, %c0_5, %c0_6] : memref<9x1x256xf32, #tpu.memory_space<vmem>>, vector<1x1x256xf32>
    %5 = vector.shape_cast %4 : vector<1x1x256xf32> to vector<1x256xf32>
    %6 = vector.broadcast %5 : vector<1x256xf32> to vector<4x256xf32>
    %7 = arith.mulf %3, %6 : vector<4x256xf32>
    %c16_i32 = arith.constant 16 : i32
    %8 = tpu.dynamic_rotate %2 by %c16_i32 dim 1 : vector<4x256xf32>, i32 -> vector<4x256xf32>
    %c1 = arith.constant 1 : index
    %c0_7 = arith.constant 0 : index
    %c0_8 = arith.constant 0 : index
    %9 = vector.load %arg3[%c1, %c0_7, %c0_8] : memref<9x1x256xf32, #tpu.memory_space<vmem>>, vector<1x1x256xf32>
    %10 = vector.shape_cast %9 : vector<1x1x256xf32> to vector<1x256xf32>
    %11 = vector.broadcast %10 : vector<1x256xf32> to vector<4x256xf32>
    %12 = arith.mulf %8, %11 : vector<4x256xf32>
    %c15_i32 = arith.constant 15 : i32
    %13 = tpu.dynamic_rotate %2 by %c15_i32 dim 1 : vector<4x256xf32>, i32 -> vector<4x256xf32>
    %c2 = arith.constant 2 : index
    %c0_9 = arith.constant 0 : index
    %c0_10 = arith.constant 0 : index
    %14 = vector.load %arg3[%c2, %c0_9, %c0_10] : memref<9x1x256xf32, #tpu.memory_space<vmem>>, vector<1x1x256xf32>
    %15 = vector.shape_cast %14 : vector<1x1x256xf32> to vector<1x256xf32>
    %16 = vector.broadcast %15 : vector<1x256xf32> to vector<4x256xf32>
    %17 = arith.mulf %13, %16 : vector<4x256xf32>
    %c1_i32 = arith.constant 1 : i32
    %18 = tpu.dynamic_rotate %2 by %c1_i32 dim 1 : vector<4x256xf32>, i32 -> vector<4x256xf32>
    %c3 = arith.constant 3 : index
    %c0_11 = arith.constant 0 : index
    %c0_12 = arith.constant 0 : index
    %19 = vector.load %arg3[%c3, %c0_11, %c0_12] : memref<9x1x256xf32, #tpu.memory_space<vmem>>, vector<1x1x256xf32>
    %20 = vector.shape_cast %19 : vector<1x1x256xf32> to vector<1x256xf32>
    %21 = vector.broadcast %20 : vector<1x256xf32> to vector<4x256xf32>
    %22 = arith.mulf %18, %21 : vector<4x256xf32>
    %c255_i32 = arith.constant 255 : i32
    %23 = tpu.dynamic_rotate %2 by %c255_i32 dim 1 : vector<4x256xf32>, i32 -> vector<4x256xf32>
    %c5 = arith.constant 5 : index
    %c0_13 = arith.constant 0 : index
    %c0_14 = arith.constant 0 : index
    %24 = vector.load %arg3[%c5, %c0_13, %c0_14] : memref<9x1x256xf32, #tpu.memory_space<vmem>>, vector<1x1x256xf32>
    %25 = vector.shape_cast %24 : vector<1x1x256xf32> to vector<1x256xf32>
    %26 = vector.broadcast %25 : vector<1x256xf32> to vector<4x256xf32>
    %27 = arith.mulf %23, %26 : vector<4x256xf32>
    %c241_i32 = arith.constant 241 : i32
    %28 = tpu.dynamic_rotate %2 by %c241_i32 dim 1 : vector<4x256xf32>, i32 -> vector<4x256xf32>
    %c6 = arith.constant 6 : index
    %c0_15 = arith.constant 0 : index
    %c0_16 = arith.constant 0 : index
    %29 = vector.load %arg3[%c6, %c0_15, %c0_16] : memref<9x1x256xf32, #tpu.memory_space<vmem>>, vector<1x1x256xf32>
    %30 = vector.shape_cast %29 : vector<1x1x256xf32> to vector<1x256xf32>
    %31 = vector.broadcast %30 : vector<1x256xf32> to vector<4x256xf32>
    %32 = arith.mulf %28, %31 : vector<4x256xf32>
    %c240_i32 = arith.constant 240 : i32
    %33 = tpu.dynamic_rotate %2 by %c240_i32 dim 1 : vector<4x256xf32>, i32 -> vector<4x256xf32>
    %c7 = arith.constant 7 : index
    %c0_17 = arith.constant 0 : index
    %c0_18 = arith.constant 0 : index
    %34 = vector.load %arg3[%c7, %c0_17, %c0_18] : memref<9x1x256xf32, #tpu.memory_space<vmem>>, vector<1x1x256xf32>
    %35 = vector.shape_cast %34 : vector<1x1x256xf32> to vector<1x256xf32>
    %36 = vector.broadcast %35 : vector<1x256xf32> to vector<4x256xf32>
    %37 = arith.mulf %33, %36 : vector<4x256xf32>
    %c239_i32 = arith.constant 239 : i32
    %38 = tpu.dynamic_rotate %2 by %c239_i32 dim 1 : vector<4x256xf32>, i32 -> vector<4x256xf32>
    %c8 = arith.constant 8 : index
    %c0_19 = arith.constant 0 : index
    %c0_20 = arith.constant 0 : index
    %39 = vector.load %arg3[%c8, %c0_19, %c0_20] : memref<9x1x256xf32, #tpu.memory_space<vmem>>, vector<1x1x256xf32>
    %40 = vector.shape_cast %39 : vector<1x1x256xf32> to vector<1x256xf32>
    %41 = vector.broadcast %40 : vector<1x256xf32> to vector<4x256xf32>
    %42 = arith.mulf %38, %41 : vector<4x256xf32>
    %43 = tpu.concatenate %7, %12, %17, %22, %2, %27, %32, %37, %42 in 0 : vector<4x256xf32>, vector<4x256xf32>, vector<4x256xf32>, vector<4x256xf32>, vector<4x256xf32>, vector<4x256xf32>, vector<4x256xf32>, vector<4x256xf32>, vector<4x256xf32> -> vector<36x256xf32>
    %44 = arith.truncf %43 : vector<36x256xf32> to vector<36x256xbf16>
    %cst = arith.constant dense<0.000000e+00> : vector<8x256xf32>
    %45 = tpu.matmul %0, %44, %cst {dimension_numbers = #tpu.dot_dimension_numbers<[1], [0], [0], [1], [0, 0, 1, 1], [], []>} : vector<8x36xbf16>, vector<36x256xbf16>, vector<8x256xf32> -> vector<8x256xf32>
    %cst_21 = arith.constant 0.000000e+00 : f32
    %46 = vector.broadcast %cst_21 : f32 to vector<8x256xf32>
    %47 = arith.maximumf %45, %46 : vector<8x256xf32>
    %c0_22 = arith.constant 0 : index
    %c0_23 = arith.constant 0 : index
    %c0_24 = arith.constant 0 : index
    %48 = vector.load %arg4[%c0_22, %c0_23, %c0_24] : memref<2x8x256xf32, #tpu.memory_space<vmem>>, vector<1x8x256xf32>
    %49 = vector.shape_cast %48 : vector<1x8x256xf32> to vector<8x256xf32>
    %50 = vector.shape_cast %47 : vector<8x256xf32> to vector<1x8x256xf32>
    tpu.vector_store %arg4[%c0_22, %c0_23, %c0_24], %50 {strides = array<i32>} : memref<2x8x256xf32, #tpu.memory_space<vmem>>, vector<1x8x256xf32>,
    %c1_25 = arith.constant 1 : index
    %c0_26 = arith.constant 0 : index
    %c0_27 = arith.constant 0 : index
    %51 = vector.load %arg1[%c1_25, %c0_26, %c0_27] : memref<2x4x256xf32, #tpu.memory_space<vmem>>, vector<1x4x256xf32>
    %52 = vector.shape_cast %51 : vector<1x4x256xf32> to vector<4x256xf32>
    %c17_i32_28 = arith.constant 17 : i32
    %53 = tpu.dynamic_rotate %52 by %c17_i32_28 dim 1 : vector<4x256xf32>, i32 -> vector<4x256xf32>
    %c0_29 = arith.constant 0 : index
    %c0_30 = arith.constant 0 : index
    %c0_31 = arith.constant 0 : index
    %54 = vector.load %arg3[%c0_29, %c0_30, %c0_31] : memref<9x1x256xf32, #tpu.memory_space<vmem>>, vector<1x1x256xf32>
    %55 = vector.shape_cast %54 : vector<1x1x256xf32> to vector<1x256xf32>
    %56 = vector.broadcast %55 : vector<1x256xf32> to vector<4x256xf32>
    %57 = arith.mulf %53, %56 : vector<4x256xf32>
    %c16_i32_32 = arith.constant 16 : i32
    %58 = tpu.dynamic_rotate %52 by %c16_i32_32 dim 1 : vector<4x256xf32>, i32 -> vector<4x256xf32>
    %c1_33 = arith.constant 1 : index
    %c0_34 = arith.constant 0 : index
    %c0_35 = arith.constant 0 : index
    %59 = vector.load %arg3[%c1_33, %c0_34, %c0_35] : memref<9x1x256xf32, #tpu.memory_space<vmem>>, vector<1x1x256xf32>
    %60 = vector.shape_cast %59 : vector<1x1x256xf32> to vector<1x256xf32>
    %61 = vector.broadcast %60 : vector<1x256xf32> to vector<4x256xf32>
    %62 = arith.mulf %58, %61 : vector<4x256xf32>
    %c15_i32_36 = arith.constant 15 : i32
    %63 = tpu.dynamic_rotate %52 by %c15_i32_36 dim 1 : vector<4x256xf32>, i32 -> vector<4x256xf32>
    %c2_37 = arith.constant 2 : index
    %c0_38 = arith.constant 0 : index
    %c0_39 = arith.constant 0 : index
    %64 = vector.load %arg3[%c2_37, %c0_38, %c0_39] : memref<9x1x256xf32, #tpu.memory_space<vmem>>, vector<1x1x256xf32>
    %65 = vector.shape_cast %64 : vector<1x1x256xf32> to vector<1x256xf32>
    %66 = vector.broadcast %65 : vector<1x256xf32> to vector<4x256xf32>
    %67 = arith.mulf %63, %66 : vector<4x256xf32>
    %c1_i32_40 = arith.constant 1 : i32
    %68 = tpu.dynamic_rotate %52 by %c1_i32_40 dim 1 : vector<4x256xf32>, i32 -> vector<4x256xf32>
    %c3_41 = arith.constant 3 : index
    %c0_42 = arith.constant 0 : index
    %c0_43 = arith.constant 0 : index
    %69 = vector.load %arg3[%c3_41, %c0_42, %c0_43] : memref<9x1x256xf32, #tpu.memory_space<vmem>>, vector<1x1x256xf32>
    %70 = vector.shape_cast %69 : vector<1x1x256xf32> to vector<1x256xf32>
    %71 = vector.broadcast %70 : vector<1x256xf32> to vector<4x256xf32>
    %72 = arith.mulf %68, %71 : vector<4x256xf32>
    %c255_i32_44 = arith.constant 255 : i32
    %73 = tpu.dynamic_rotate %52 by %c255_i32_44 dim 1 : vector<4x256xf32>, i32 -> vector<4x256xf32>
    %c5_45 = arith.constant 5 : index
    %c0_46 = arith.constant 0 : index
    %c0_47 = arith.constant 0 : index
    %74 = vector.load %arg3[%c5_45, %c0_46, %c0_47] : memref<9x1x256xf32, #tpu.memory_space<vmem>>, vector<1x1x256xf32>
    %75 = vector.shape_cast %74 : vector<1x1x256xf32> to vector<1x256xf32>
    %76 = vector.broadcast %75 : vector<1x256xf32> to vector<4x256xf32>
    %77 = arith.mulf %73, %76 : vector<4x256xf32>
    %c241_i32_48 = arith.constant 241 : i32
    %78 = tpu.dynamic_rotate %52 by %c241_i32_48 dim 1 : vector<4x256xf32>, i32 -> vector<4x256xf32>
    %c6_49 = arith.constant 6 : index
    %c0_50 = arith.constant 0 : index
    %c0_51 = arith.constant 0 : index
    %79 = vector.load %arg3[%c6_49, %c0_50, %c0_51] : memref<9x1x256xf32, #tpu.memory_space<vmem>>, vector<1x1x256xf32>
    %80 = vector.shape_cast %79 : vector<1x1x256xf32> to vector<1x256xf32>
    %81 = vector.broadcast %80 : vector<1x256xf32> to vector<4x256xf32>
    %82 = arith.mulf %78, %81 : vector<4x256xf32>
    %c240_i32_52 = arith.constant 240 : i32
    %83 = tpu.dynamic_rotate %52 by %c240_i32_52 dim 1 : vector<4x256xf32>, i32 -> vector<4x256xf32>
    %c7_53 = arith.constant 7 : index
    %c0_54 = arith.constant 0 : index
    %c0_55 = arith.constant 0 : index
    %84 = vector.load %arg3[%c7_53, %c0_54, %c0_55] : memref<9x1x256xf32, #tpu.memory_space<vmem>>, vector<1x1x256xf32>
    %85 = vector.shape_cast %84 : vector<1x1x256xf32> to vector<1x256xf32>
    %86 = vector.broadcast %85 : vector<1x256xf32> to vector<4x256xf32>
    %87 = arith.mulf %83, %86 : vector<4x256xf32>
    %c239_i32_56 = arith.constant 239 : i32
    %88 = tpu.dynamic_rotate %52 by %c239_i32_56 dim 1 : vector<4x256xf32>, i32 -> vector<4x256xf32>
    %c8_57 = arith.constant 8 : index
    %c0_58 = arith.constant 0 : index
    %c0_59 = arith.constant 0 : index
    %89 = vector.load %arg3[%c8_57, %c0_58, %c0_59] : memref<9x1x256xf32, #tpu.memory_space<vmem>>, vector<1x1x256xf32>
    %90 = vector.shape_cast %89 : vector<1x1x256xf32> to vector<1x256xf32>
    %91 = vector.broadcast %90 : vector<1x256xf32> to vector<4x256xf32>
    %92 = arith.mulf %88, %91 : vector<4x256xf32>
    %93 = tpu.concatenate %57, %62, %67, %72, %52, %77, %82, %87, %92 in 0 : vector<4x256xf32>, vector<4x256xf32>, vector<4x256xf32>, vector<4x256xf32>, vector<4x256xf32>, vector<4x256xf32>, vector<4x256xf32>, vector<4x256xf32>, vector<4x256xf32> -> vector<36x256xf32>
    %94 = arith.truncf %93 : vector<36x256xf32> to vector<36x256xbf16>
    %cst_60 = arith.constant dense<0.000000e+00> : vector<8x256xf32>
    %95 = tpu.matmul %0, %94, %cst_60 {dimension_numbers = #tpu.dot_dimension_numbers<[1], [0], [0], [1], [0, 0, 1, 1], [], []>} : vector<8x36xbf16>, vector<36x256xbf16>, vector<8x256xf32> -> vector<8x256xf32>
    %cst_61 = arith.constant 0.000000e+00 : f32
    %96 = vector.broadcast %cst_61 : f32 to vector<8x256xf32>
    %97 = arith.maximumf %95, %96 : vector<8x256xf32>
    %c1_62 = arith.constant 1 : index
    %c0_63 = arith.constant 0 : index
    %c0_64 = arith.constant 0 : index
    %98 = vector.load %arg4[%c1_62, %c0_63, %c0_64] : memref<2x8x256xf32, #tpu.memory_space<vmem>>, vector<1x8x256xf32>
    %99 = vector.shape_cast %98 : vector<1x8x256xf32> to vector<8x256xf32>
    %100 = vector.shape_cast %97 : vector<8x256xf32> to vector<1x8x256xf32>
    tpu.vector_store %arg4[%c1_62, %c0_63, %c0_64], %100 {strides = array<i32>} : memref<2x8x256xf32, #tpu.memory_space<vmem>>, vector<1x8x256xf32>,
    return
  }
  func.func @transform_0(%arg0: i32) -> (i32, i32, i32) {
    %c0_i32 = arith.constant 0 : i32
    %c0_i32_0 = arith.constant 0 : i32
    %c0_i32_1 = arith.constant 0 : i32
    return %arg0, %c0_i32, %c0_i32_0 : i32, i32, i32
  }
  func.func @transform_1(%arg0: i32) -> (i32, i32) {
    %c0_i32 = arith.constant 0 : i32
    %c0_i32_0 = arith.constant 0 : i32
    %c0_i32_1 = arith.constant 0 : i32
    return %c0_i32, %c0_i32_0 : i32, i32
  }
  func.func @transform_2(%arg0: i32) -> (i32, i32, i32) {
    %c0_i32 = arith.constant 0 : i32
    %c0_i32_0 = arith.constant 0 : i32
    %c0_i32_1 = arith.constant 0 : i32
    %c0_i32_2 = arith.constant 0 : i32
    return %c0_i32, %c0_i32_0, %c0_i32_1 : i32, i32, i32
  }
  func.func @transform_3(%arg0: i32) -> (i32, i32, i32) {
    %c0_i32 = arith.constant 0 : i32
    %c0_i32_0 = arith.constant 0 : i32
    %c0_i32_1 = arith.constant 0 : i32
    return %arg0, %c0_i32, %c0_i32_0 : i32, i32, i32
  }
}

</mosaic_0001>

<llo_original>
// kernel: basic_block_forward.1
$region0: #{basic_block_forward.1}
  #allocation0 [shape = 'u32[]', space=smem, size = 0x4, offset = 0x4, fixed_abs, tag = 'smem constant byte address 0x4 - core index']
  #allocation1 [shape = 'u32[144,128]{1,0:T(1,128)}', space=vmem, size = 0x12000, scoped, tag = 'internal scratch']
  %s0 = inlined_call_operand.vmem [shape: f32[2,4,256], index: 0, kind: input, shape index: {}]
  %s1 = inlined_call_operand.vmem [shape: bf16[8,36], index: 1, kind: input, shape index: {}]
  %s2 = inlined_call_operand.vmem [shape: f32[9,1,256], index: 2, kind: input, shape index: {}]
  %s3 = inlined_call_operand.vmem [shape: f32[2,8,256], index: 3, kind: output, shape index: {}]
  %s4 = sld [smem:[#allocation0]]
  $region22: #{basic_block_forward.1} parent=0
    _
  %s6 = ssub.s32 1, %s4
  %s7 = scalar_select 0, %s6, %s4
  // Predicated region
  $region2: #{basic_block_forward.1} parent=0 // pred_check
    _
  $region3: #{basic_block_forward.1} parent=0 // pred_check_branch
    %9 = sbr.rel (0) target = $region5
  $region4: #{basic_block_forward.1} parent=0 // pred_region
    _
  $region5: #{basic_block_forward.1} parent=0 // pred_fallthru
    _
  // Predicated region
  $region6: #{basic_block_forward.1} parent=0 // pred_check
    _
  $region7: #{basic_block_forward.1} parent=0 // pred_check_branch
    %11 = sbr.rel (0) target = $region9
  $region8: #{basic_block_forward.1} parent=0 // pred_region
    _
  $region9: #{basic_block_forward.1} parent=0 // pred_fallthru
    _
  // Predicated region
  $region10: #{basic_block_forward.1} parent=0 // pred_check
    _
  $region11: #{basic_block_forward.1} parent=0 // pred_check_branch
    %13 = sbr.rel (0) target = $region13
  $region12: #{basic_block_forward.1} parent=0 // pred_region
    _
  $region13: #{basic_block_forward.1} parent=0 // pred_fallthru
    _
  %v15 = vld [vmem:[%s1] sm:$0xf]
  %v16 = vld [vmem:[%s0] sm:$0xff]
  %v18 = vcombine.high %v16, %v16
  %20 = vrot.lane.b32.xlu0 %v16, 17
  %v21 = vpop.permute.xlu0 %20
  %22 = vrot.lane.b32.xlu0 %v18, 17
  %v23 = vpop.permute.xlu0 %22
  %v24 = vlaneseq
  %v25 = vand.u32 %v24, 127
  %vm26 = vcmp.lt.s32.totalorder %v25, 17
  %v27 = vsel %vm26, %v21, %v23
  %v28 = vsel %vm26, %v23, %v21
  %v29 = vld [vmem:[%s2] sm:$0x3]
  %v31 = vlaneseq
  %v32 = vshrl.u32 %v31, 7
  %v33 = vsub.s32 0, %v32
  %v34 = vrot.slane %v29, %v33
  %v35 = vlaneseq
  %v36 = vshrl.u32 %v35, 7
  %v37 = vsub.s32 1, %v36
  %v38 = vrot.slane %v29, %v37
  %v41 = vmul.f32 %v28, %v34
  %v42 = vmul.f32 %v27, %v38
  %43 = vrot.lane.b32.xlu0 %v16, 16
  %v44 = vpop.permute.xlu0 %43
  %45 = vrot.lane.b32.xlu0 %v18, 16
  %v46 = vpop.permute.xlu0 %45
  %vm47 = vcmp.lt.s32.totalorder %v25, 16
  %v48 = vsel %vm47, %v44, %v46
  %v49 = vsel %vm47, %v46, %v44
  %s50 = scalar_lea.vmem %s2, 2
  %v51 = vld [vmem:[%s50] sm:$0x3]
  %v53 = vlaneseq
  %v54 = vshrl.u32 %v53, 7
  %v55 = vsub.s32 0, %v54
  %v56 = vrot.slane %v51, %v55
  %v57 = vlaneseq
  %v58 = vshrl.u32 %v57, 7
  %v59 = vsub.s32 1, %v58
  %v60 = vrot.slane %v51, %v59
  %v63 = vmul.f32 %v49, %v56
  %v64 = vmul.f32 %v48, %v60
  %65 = vrot.lane.b32.xlu0 %v16, 15
  %v66 = vpop.permute.xlu0 %65
  %67 = vrot.lane.b32.xlu0 %v18, 15
  %v68 = vpop.permute.xlu0 %67
  %vm69 = vcmp.lt.s32.totalorder %v25, 15
  %v70 = vsel %vm69, %v66, %v68
  %v71 = vsel %vm69, %v68, %v66
  %s72 = scalar_lea.vmem %s2, 4
  %v73 = vld [vmem:[%s72] sm:$0x3]
  %v75 = vlaneseq
  %v76 = vshrl.u32 %v75, 7
  %v77 = vsub.s32 0, %v76
  %v78 = vrot.slane %v73, %v77
  %v79 = vlaneseq
  %v80 = vshrl.u32 %v79, 7
  %v81 = vsub.s32 1, %v80
  %v82 = vrot.slane %v73, %v81
  %v85 = vmul.f32 %v71, %v78
  %v86 = vmul.f32 %v70, %v82
  %87 = vrot.lane.b32.xlu0 %v16, 1
  %v88 = vpop.permute.xlu0 %87
  %89 = vrot.lane.b32.xlu0 %v18, 1
  %v90 = vpop.permute.xlu0 %89
  %vm91 = vcmp.lt.s32.totalorder %v25, 1
  %v92 = vsel %vm91, %v88, %v90
  %v93 = vsel %vm91, %v90, %v88
  %s94 = scalar_lea.vmem %s2, 6
  %v95 = vld [vmem:[%s94] sm:$0x3]
  %v97 = vlaneseq
  %v98 = vshrl.u32 %v97, 7
  %v99 = vsub.s32 0, %v98
  %v100 = vrot.slane %v95, %v99
  %v101 = vlaneseq
  %v102 = vshrl.u32 %v101, 7
  %v103 = vsub.s32 1, %v102
  %v104 = vrot.slane %v95, %v103
  %v107 = vmul.f32 %v93, %v100
  %v108 = vmul.f32 %v92, %v104
  %109 = vrot.lane.b32.xlu0 %v16, 127
  %v110 = vpop.permute.xlu0 %109
  %111 = vrot.lane.b32.xlu0 %v18, 127
  %v112 = vpop.permute.xlu0 %111
  %vm113 = vcmp.lt.s32.totalorder %v25, 127
  %v114 = vsel %vm113, %v110, %v112
  %v115 = vsel %vm113, %v112, %v110
  %s116 = scalar_lea.vmem %s2, 10
  %v117 = vld [vmem:[%s116] sm:$0x3]
  %v119 = vlaneseq
  %v120 = vshrl.u32 %v119, 7
  %v121 = vsub.s32 0, %v120
  %v122 = vrot.slane %v117, %v121
  %v123 = vlaneseq
  %v124 = vshrl.u32 %v123, 7
  %v125 = vsub.s32 1, %v124
  %v126 = vrot.slane %v117, %v125
  %v129 = vmul.f32 %v114, %v122
  %v130 = vmul.f32 %v115, %v126
  %131 = vrot.lane.b32.xlu0 %v16, 113
  %v132 = vpop.permute.xlu0 %131
  %133 = vrot.lane.b32.xlu0 %v18, 113
  %v134 = vpop.permute.xlu0 %133
  %vm135 = vcmp.lt.s32.totalorder %v25, 113
  %v136 = vsel %vm135, %v132, %v134
  %v137 = vsel %vm135, %v134, %v132
  %s138 = scalar_lea.vmem %s2, 12
  %v139 = vld [vmem:[%s138] sm:$0x3]
  %v141 = vlaneseq
  %v142 = vshrl.u32 %v141, 7
  %v143 = vsub.s32 0, %v142
  %v144 = vrot.slane %v139, %v143
  %v145 = vlaneseq
  %v146 = vshrl.u32 %v145, 7
  %v147 = vsub.s32 1, %v146
  %v148 = vrot.slane %v139, %v147
  %v151 = vmul.f32 %v136, %v144
  %v152 = vmul.f32 %v137, %v148
  %153 = vrot.lane.b32.xlu0 %v16, 112
  %v154 = vpop.permute.xlu0 %153
  %155 = vrot.lane.b32.xlu0 %v18, 112
  %v156 = vpop.permute.xlu0 %155
  %vm157 = vcmp.lt.s32.totalorder %v25, 112
  %v158 = vsel %vm157, %v154, %v156
  %v159 = vsel %vm157, %v156, %v154
  %s160 = scalar_lea.vmem %s2, 14
  %v161 = vld [vmem:[%s160] sm:$0x3]
  %v163 = vlaneseq
  %v164 = vshrl.u32 %v163, 7
  %v165 = vsub.s32 0, %v164
  %v166 = vrot.slane %v161, %v165
  %v167 = vlaneseq
  %v168 = vshrl.u32 %v167, 7
  %v169 = vsub.s32 1, %v168
  %v170 = vrot.slane %v161, %v169
  %v173 = vmul.f32 %v158, %v166
  %v174 = vmul.f32 %v159, %v170
  %175 = vrot.lane.b32.xlu0 %v16, 111
  %v176 = vpop.permute.xlu0 %175
  %177 = vrot.lane.b32.xlu0 %v18, 111
  %v178 = vpop.permute.xlu0 %177
  %vm179 = vcmp.lt.s32.totalorder %v25, 111
  %v180 = vsel %vm179, %v176, %v178
  %v181 = vsel %vm179, %v178, %v176
  %s182 = scalar_lea.vmem %s2, 16
  %v183 = vld [vmem:[%s182] sm:$0x3]
  %v185 = vlaneseq
  %v186 = vshrl.u32 %v185, 7
  %v187 = vsub.s32 0, %v186
  %v188 = vrot.slane %v183, %v187
  %v189 = vlaneseq
  %v190 = vshrl.u32 %v189, 7
  %v191 = vsub.s32 1, %v190
  %v192 = vrot.slane %v183, %v191
  %v195 = vmul.f32 %v180, %v188
  %v196 = vmul.f32 %v181, %v192
  %v199 = vrot.slane %v63, 4
  %v200 = vrot.slane %v64, 4
  %v205 = vrot.slane %v107, 4
  %v206 = vrot.slane %v108, 4
  %v211 = vrot.slane %v129, 4
  %v212 = vrot.slane %v130, 4
  %v217 = vrot.slane %v173, 4
  %v218 = vrot.slane %v174, 4
  %vm221 = vcmask 1043456
  %v222 = vsel %vm221, %v41, %v199
  %v223 = vsel %vm221, %v42, %v200
  %v224 = vsel %vm221, %v85, %v205
  %v225 = vsel %vm221, %v86, %v206
  %v226 = vsel %vm221, %v16, %v211
  %v227 = vsel %vm221, %v18, %v212
  %v228 = vsel %vm221, %v151, %v217
  %v229 = vsel %vm221, %v152, %v218
  %v230 = vpack.c.bf16 %v224, %v222
  %v231 = vpack.c.bf16 %v225, %v223
  %v232 = vpack.c.bf16 %v228, %v226
  %v233 = vpack.c.bf16 %v229, %v227
  %v234 = vpack.c.bf16 %v195, %v195
  %v235 = vpack.c.bf16 %v196, %v196
  %vm236 = vcmask 293888
  %v238 = vsel %vm236, %v15, 0
  %vm240 = vcmask 1041408
  %v242 = vsel %vm240, %v234, 0
  %v245 = vsel %vm240, %v235, 0
  %247 = vmatprep.subr.bf16.mxu0 %v231
  %248 = vmatpush1.bf16.msra.mxu0 %v230
  %249 = vmatprep.subr.bf16.mxu0 %v233
  %250 = vmatpush1.bf16.msra.mxu0 %v232
  %251 = vmatprep.subr.bf16.mxu0 %v245
  %252 = vmatpush1.bf16.msra.mxu0 %v242
  %253 = vmatprep.subr.bf16.mxu0 0
  %254 = vmatpush1.bf16.msra.mxu0 0
  %255 = vmatprep.subr.bf16.mxu0 0
  %256 = vmatpush1.bf16.msra.mxu0 0
  %257 = vmatprep.subr.bf16.mxu0 0
  %258 = vmatpush1.bf16.msra.mxu0 0
  %259 = vmatprep.subr.bf16.mxu0 0
  %260 = vmatpush1.bf16.msra.mxu0 0
  %261 = vmatprep.subr.bf16.mxu0 0
  %262 = vmatpush1.bf16.msra.mxu0 0
  %263 = vmatprep.subr.bf16.mxu0 0
  %264 = vmatpush1.bf16.msra.mxu0 0
  %265 = vmatprep.subr.bf16.mxu0 0
  %266 = vmatpush1.bf16.msra.mxu0 0
  %267 = vmatprep.subr.bf16.mxu0 0
  %268 = vmatpush1.bf16.msra.mxu0 0
  %269 = vmatprep.subr.bf16.mxu0 0
  %270 = vmatpush1.bf16.msra.mxu0 0
  %271 = vmatprep.subr.bf16.mxu0 0
  %272 = vmatpush1.bf16.msra.mxu0 0
  %273 = vmatprep.subr.bf16.mxu0 0
  %274 = vmatpush1.bf16.msra.mxu0 0
  %275 = vmatprep.subr.bf16.mxu0 0
  %276 = vmatpush1.bf16.msra.mxu0 0
  %277 = vmatprep.subr.bf16.mxu0 0
  %278 = vmatpush1.bf16.msra.mxu0 0
  %279 = vmatprep.mubr.bf16.mxu0 0
  %280 = vmatmul.mubr.bf16.gmra.mrb[0].mxu0 %v238
  %v281 = vpop.f32.mrb[0].mxu0
  %v282 = vadd.f32 0.0, %v281
  %v283 = vpop.f32.mrb[0].mxu0
  %v284 = vadd.f32 0.0, %v283
  %v285 = vpop.f32.mrb[0].mxu0
  %v286 = vpop.f32.mrb[0].mxu0
  %287 = vdwg.mxu0
  %v288 = vmax.f32 %v282, 0.0
  %v289 = vmax.f32 %v284, 0.0
  %290 = vst [vmem:[%s3] sm:$0xff] %v288
  %291 = vst [vmem:[%s3 + $0x8] sm:$0xff] %v289
  %s292 = scalar_lea.vmem %s0, 8
  %v293 = vld [vmem:[%s292] sm:$0xff]
  %v295 = vcombine.high %v293, %v293
  %297 = vrot.lane.b32.xlu0 %v293, 17
  %v298 = vpop.permute.xlu0 %297
  %299 = vrot.lane.b32.xlu0 %v295, 17
  %v300 = vpop.permute.xlu0 %299
  %v301 = vsel %vm26, %v298, %v300
  %v302 = vsel %vm26, %v300, %v298
  %v303 = vld [vmem:[%s2] sm:$0x3]
  %v305 = vlaneseq
  %v306 = vshrl.u32 %v305, 7
  %v307 = vsub.s32 0, %v306
  %v308 = vrot.slane %v303, %v307
  %v309 = vlaneseq
  %v310 = vshrl.u32 %v309, 7
  %v311 = vsub.s32 1, %v310
  %v312 = vrot.slane %v303, %v311
  %v315 = vmul.f32 %v302, %v308
  %v316 = vmul.f32 %v301, %v312
  %317 = vrot.lane.b32.xlu0 %v293, 16
  %v318 = vpop.permute.xlu0 %317
  %319 = vrot.lane.b32.xlu0 %v295, 16
  %v320 = vpop.permute.xlu0 %319
  %v321 = vsel %vm47, %v318, %v320
  %v322 = vsel %vm47, %v320, %v318
  %v323 = vld [vmem:[%s50] sm:$0x3]
  %v325 = vlaneseq
  %v326 = vshrl.u32 %v325, 7
  %v327 = vsub.s32 0, %v326
  %v328 = vrot.slane %v323, %v327
  %v329 = vlaneseq
  %v330 = vshrl.u32 %v329, 7
  %v331 = vsub.s32 1, %v330
  %v332 = vrot.slane %v323, %v331
  %v335 = vmul.f32 %v322, %v328
  %v336 = vmul.f32 %v321, %v332
  %337 = vrot.lane.b32.xlu0 %v293, 15
  %v338 = vpop.permute.xlu0 %337
  %339 = vrot.lane.b32.xlu0 %v295, 15
  %v340 = vpop.permute.xlu0 %339
  %v341 = vsel %vm69, %v338, %v340
  %v342 = vsel %vm69, %v340, %v338
  %v343 = vld [vmem:[%s72] sm:$0x3]
  %v345 = vlaneseq
  %v346 = vshrl.u32 %v345, 7
  %v347 = vsub.s32 0, %v346
  %v348 = vrot.slane %v343, %v347
  %v349 = vlaneseq
  %v350 = vshrl.u32 %v349, 7
  %v351 = vsub.s32 1, %v350
  %v352 = vrot.slane %v343, %v351
  %v355 = vmul.f32 %v342, %v348
  %v356 = vmul.f32 %v341, %v352
  %357 = vrot.lane.b32.xlu0 %v293, 1
  %v358 = vpop.permute.xlu0 %357
  %359 = vrot.lane.b32.xlu0 %v295, 1
  %v360 = vpop.permute.xlu0 %359
  %v361 = vsel %vm91, %v358, %v360
  %v362 = vsel %vm91, %v360, %v358
  %v363 = vld [vmem:[%s94] sm:$0x3]
  %v365 = vlaneseq
  %v366 = vshrl.u32 %v365, 7
  %v367 = vsub.s32 0, %v366
  %v368 = vrot.slane %v363, %v367
  %v369 = vlaneseq
  %v370 = vshrl.u32 %v369, 7
  %v371 = vsub.s32 1, %v370
  %v372 = vrot.slane %v363, %v371
  %v375 = vmul.f32 %v362, %v368
  %v376 = vmul.f32 %v361, %v372
  %377 = vrot.lane.b32.xlu0 %v293, 127
  %v378 = vpop.permute.xlu0 %377
  %379 = vrot.lane.b32.xlu0 %v295, 127
  %v380 = vpop.permute.xlu0 %379
  %v381 = vsel %vm113, %v378, %v380
  %v382 = vsel %vm113, %v380, %v378
  %v383 = vld [vmem:[%s116] sm:$0x3]
  %v385 = vlaneseq
  %v386 = vshrl.u32 %v385, 7
  %v387 = vsub.s32 0, %v386
  %v388 = vrot.slane %v383, %v387
  %v389 = vlaneseq
  %v390 = vshrl.u32 %v389, 7
  %v391 = vsub.s32 1, %v390
  %v392 = vrot.slane %v383, %v391
  %v395 = vmul.f32 %v381, %v388
  %v396 = vmul.f32 %v382, %v392
  %397 = vrot.lane.b32.xlu0 %v293, 113
  %v398 = vpop.permute.xlu0 %397
  %399 = vrot.lane.b32.xlu0 %v295, 113
  %v400 = vpop.permute.xlu0 %399
  %v401 = vsel %vm135, %v398, %v400
  %v402 = vsel %vm135, %v400, %v398
  %v403 = vld [vmem:[%s138] sm:$0x3]
  %v405 = vlaneseq
  %v406 = vshrl.u32 %v405, 7
  %v407 = vsub.s32 0, %v406
  %v408 = vrot.slane %v403, %v407
  %v409 = vlaneseq
  %v410 = vshrl.u32 %v409, 7
  %v411 = vsub.s32 1, %v410
  %v412 = vrot.slane %v403, %v411
  %v415 = vmul.f32 %v401, %v408
  %v416 = vmul.f32 %v402, %v412
  %417 = vrot.lane.b32.xlu0 %v293, 112
  %v418 = vpop.permute.xlu0 %417
  %419 = vrot.lane.b32.xlu0 %v295, 112
  %v420 = vpop.permute.xlu0 %419
  %v421 = vsel %vm157, %v418, %v420
  %v422 = vsel %vm157, %v420, %v418
  %v423 = vld [vmem:[%s160] sm:$0x3]
  %v425 = vlaneseq
  %v426 = vshrl.u32 %v425, 7
  %v427 = vsub.s32 0, %v426
  %v428 = vrot.slane %v423, %v427
  %v429 = vlaneseq
  %v430 = vshrl.u32 %v429, 7
  %v431 = vsub.s32 1, %v430
  %v432 = vrot.slane %v423, %v431
  %v435 = vmul.f32 %v421, %v428
  %v436 = vmul.f32 %v422, %v432
  %437 = vrot.lane.b32.xlu0 %v293, 111
  %v438 = vpop.permute.xlu0 %437
  %439 = vrot.lane.b32.xlu0 %v295, 111
  %v440 = vpop.permute.xlu0 %439
  %v441 = vsel %vm179, %v438, %v440
  %v442 = vsel %vm179, %v440, %v438
  %v443 = vld [vmem:[%s182] sm:$0x3]
  %v445 = vlaneseq
  %v446 = vshrl.u32 %v445, 7
  %v447 = vsub.s32 0, %v446
  %v448 = vrot.slane %v443, %v447
  %v449 = vlaneseq
  %v450 = vshrl.u32 %v449, 7
  %v451 = vsub.s32 1, %v450
  %v452 = vrot.slane %v443, %v451
  %v455 = vmul.f32 %v441, %v448
  %v456 = vmul.f32 %v442, %v452
  %v459 = vrot.slane %v335, 4
  %v460 = vrot.slane %v336, 4
  %v465 = vrot.slane %v375, 4
  %v466 = vrot.slane %v376, 4
  %v471 = vrot.slane %v395, 4
  %v472 = vrot.slane %v396, 4
  %v477 = vrot.slane %v435, 4
  %v478 = vrot.slane %v436, 4
  %v481 = vsel %vm221, %v315, %v459
  %v482 = vsel %vm221, %v316, %v460
  %v483 = vsel %vm221, %v355, %v465
  %v484 = vsel %vm221, %v356, %v466
  %v485 = vsel %vm221, %v293, %v471
  %v486 = vsel %vm221, %v295, %v472
  %v487 = vsel %vm221, %v415, %v477
  %v488 = vsel %vm221, %v416, %v478
  %v489 = vpack.c.bf16 %v483, %v481
  %v490 = vpack.c.bf16 %v484, %v482
  %v491 = vpack.c.bf16 %v487, %v485
  %v492 = vpack.c.bf16 %v488, %v486
  %v493 = vpack.c.bf16 %v455, %v455
  %v494 = vpack.c.bf16 %v456, %v456
  %v496 = vsel %vm240, %v493, 0
  %v499 = vsel %vm240, %v494, 0
  %501 = vmatprep.subr.bf16.mxu0 %v490
  %502 = vmatpush1.bf16.msra.mxu0 %v489
  %503 = vmatprep.subr.bf16.mxu0 %v492
  %504 = vmatpush1.bf16.msra.mxu0 %v491
  %505 = vmatprep.subr.bf16.mxu0 %v499
  %506 = vmatpush1.bf16.msra.mxu0 %v496
  %507 = vmatprep.subr.bf16.mxu0 0
  %508 = vmatpush1.bf16.msra.mxu0 0
  %509 = vmatprep.subr.bf16.mxu0 0
  %510 = vmatpush1.bf16.msra.mxu0 0
  %511 = vmatprep.subr.bf16.mxu0 0
  %512 = vmatpush1.bf16.msra.mxu0 0
  %513 = vmatprep.subr.bf16.mxu0 0
  %514 = vmatpush1.bf16.msra.mxu0 0
  %515 = vmatprep.subr.bf16.mxu0 0
  %516 = vmatpush1.bf16.msra.mxu0 0
  %517 = vmatprep.subr.bf16.mxu0 0
  %518 = vmatpush1.bf16.msra.mxu0 0
  %519 = vmatprep.subr.bf16.mxu0 0
  %520 = vmatpush1.bf16.msra.mxu0 0
  %521 = vmatprep.subr.bf16.mxu0 0
  %522 = vmatpush1.bf16.msra.mxu0 0
  %523 = vmatprep.subr.bf16.mxu0 0
  %524 = vmatpush1.bf16.msra.mxu0 0
  %525 = vmatprep.subr.bf16.mxu0 0
  %526 = vmatpush1.bf16.msra.mxu0 0
  %527 = vmatprep.subr.bf16.mxu0 0
  %528 = vmatpush1.bf16.msra.mxu0 0
  %529 = vmatprep.subr.bf16.mxu0 0
  %530 = vmatpush1.bf16.msra.mxu0 0
  %531 = vmatprep.subr.bf16.mxu0 0
  %532 = vmatpush1.bf16.msra.mxu0 0
  %533 = vmatprep.mubr.bf16.mxu0 0
  %534 = vmatmul.mubr.bf16.gmra.mrb[0].mxu0 %v238
  %v535 = vpop.f32.mrb[0].mxu0
  %v536 = vadd.f32 0.0, %v535
  %v537 = vpop.f32.mrb[0].mxu0
  %v538 = vadd.f32 0.0, %v537
  %v539 = vpop.f32.mrb[0].mxu0
  %v540 = vpop.f32.mrb[0].mxu0
  %541 = vdwg.mxu0
  %v542 = vmax.f32 %v536, 0.0
  %v543 = vmax.f32 %v538, 0.0
  %s544 = scalar_lea.vmem %s3, 16
  %545 = vst [vmem:[%s544] sm:$0xff] %v542
  %546 = vst [vmem:[%s544 + $0x8] sm:$0xff] %v543
  // Predicated region
  $region14: #{basic_block_forward.1} parent=0 // pred_check
    _
  $region15: #{basic_block_forward.1} parent=0 // pred_check_branch
    %548 = sbr.rel (0) target = $region17
  $region16: #{basic_block_forward.1} parent=0 // pred_region
    _
  $region17: #{basic_block_forward.1} parent=0 // pred_fallthru
    _
  // Predicated region
  $region18: #{basic_block_forward.1} parent=0 // pred_check
    _
  $region19: #{basic_block_forward.1} parent=0 // pred_check_branch
    %550 = sbr.rel (0) target = $region21
  $region20: #{basic_block_forward.1} parent=0 // pred_region
    _
  $region21: #{basic_block_forward.1} parent=0 // pred_fallthru
    _

</llo_original>
